<compile_context>
chip_gen: v5e
topology: v5e:2x2
jax: 0.10.0
libtpu: 0.0.40
codegen_flags: <defaults>
</compile_context>

<pallas_src>
import functools

import jax
import jax.numpy as jnp
from jax.experimental import pallas as pl
from jax.experimental.pallas import tpu as pltpu


# ---------------------------------------------------------------------------
# Kernel
# ---------------------------------------------------------------------------
def gate_kernel(x_ref, y_ref, wcat_ref, ucat_ref, ug_ref, bz_ref, o_ref, *,
                compute_dtype):
    """One row-tile of the Gate forward pass (3 fused MXU matmuls)."""
    H = x_ref.shape[-1]

    # Single load of the x tile; f32 copy for gate math, compute_dtype for MXU.
    xv = x_ref[...]
    x32 = xv.astype(jnp.float32)
    xc = xv.astype(compute_dtype)
    yc = y_ref[...].astype(compute_dtype)

    # Fused matmuls: yW = [y@Wr | y@Wz | y@Wg], xU = [x@Ur | x@Uz].
    yw = jnp.dot(yc, wcat_ref[...], preferred_element_type=jnp.float32)  # (tm, 3H)
    xu = jnp.dot(xc, ucat_ref[...], preferred_element_type=jnp.float32)  # (tm, 2H)

    r = jax.nn.sigmoid(yw[:, 0:H] + xu[:, 0:H])
    z = jax.nn.sigmoid(yw[:, H:2 * H] + bz_ref[...] + xu[:, H:2 * H])

    # Dependent matmul: Ug(r * x).
    rx = (r * x32).astype(compute_dtype)
    h = jnp.tanh(yw[:, 2 * H:3 * H]
                 + jnp.dot(rx, ug_ref[...], preferred_element_type=jnp.float32))

    # g = (1 - z) * x + z * h  ==  x + z * (h - x)
    o_ref[...] = (x32 + z * (h - x32)).astype(o_ref.dtype)


# ---------------------------------------------------------------------------
# Host-side helpers
# ---------------------------------------------------------------------------
def _round_up(a, b):
    return ((a + b - 1) // b) * b


def _vmem_budget_bytes():
    """Per-chip VMEM capacity with ~20% headroom for compiler scratch/spills."""
    cap = 64 << 20  # smallest per-TC VMEM (v7x) — safe fallback
    try:
        info = pltpu.get_tpu_info()
        cap = int(getattr(info, "vmem_capacity_bytes", cap))
    except Exception:
        pass
    return int(cap * 0.8)


def _resident_spec(shape):
    """BlockSpec for a weight that is fully resident (constant index_map).

    Single-buffered: the runtime only DMAs it once, so double-buffering would
    just double its VMEM footprint.
    """
    idx = lambda i: (0,) * len(shape)
    try:
        return pl.BlockSpec(shape, idx, pipeline_mode=pl.Buffered(1))
    except TypeError:  # older BlockSpec signature without pipeline_mode
        return pl.BlockSpec(shape, idx)


def pack_gate_params(params, compute_dtype=jnp.bfloat16):
    """Pack/quantize weights ONCE (outside the per-forward hot path).

    Returns: wcat (H,3H) = [Wr|Wz|Wg], ucat (H,2H) = [Ur|Uz], ug (H,H), bz (1,H).
    """
    wcat = jnp.concatenate([params["wr"], params["wz"], params["wg"]],
                           axis=1).astype(compute_dtype)
    ucat = jnp.concatenate([params["ur"], params["uz"]],
                           axis=1).astype(compute_dtype)
    ug = params["ug"].astype(compute_dtype)
    bz = params["bz"].reshape(1, -1).astype(jnp.float32)
    return dict(wcat=wcat, ucat=ucat, ug=ug, bz=bz)


@functools.partial(jax.jit, static_argnames=("tm",))
def gate_forward(x, y, wcat, ucat, ug, bz, *, tm=512):
    """x, y: [batch, seq, hidden] (f32 or bf16). Pre-packed weights from
    pack_gate_params(). Output dtype == x dtype."""
    orig_shape = x.shape
    H = orig_shape[-1]
    x2 = x.reshape(-1, H)
    y2 = y.reshape(-1, H)
    N = x2.shape[0]

    compute_dtype = wcat.dtype  # MXU input dtype is set by the packed weights
    w_itemsize = jnp.dtype(compute_dtype).itemsize
    a_itemsize = jnp.dtype(x.dtype).itemsize

    # Single-buffered resident weights + bias.
    w_bytes = 6 * H * H * w_itemsize + 4 * H

    # Row tile: large to fill the MXU / amortize ~0.35us per-step overhead,
    # but guarantee >= 2 grid steps so both v7x TensorCores get work, and
    # shrink if the double-buffered activation tiles would blow the VMEM budget.
    budget = _vmem_budget_bytes()
    tm_eff = min(tm, max(_round_up(pl.cdiv(N, 2), 8), 8))
    while tm_eff > 8:
        act_bytes = 2 * 3 * tm_eff * H * a_itemsize  # x, y, out double-buffered
        if w_bytes + act_bytes + (2 << 20) <= budget:
            break
        tm_eff = max(8, _round_up(tm_eff // 2, 8))

    act_bytes = 2 * 3 * tm_eff * H * a_itemsize
    vmem_need = w_bytes + act_bytes + (2 << 20)
    vmem_limit = int(min(budget, max(vmem_need, 32 << 20)))

    row_spec = pl.BlockSpec((tm_eff, H), lambda i: (i, 0))
    wcat_spec = _resident_spec((H, 3 * H))
    ucat_spec = _resident_spec((H, 2 * H))
    ug_spec = _resident_spec((H, H))
    b_spec = _resident_spec((1, H))

    cost = pl.CostEstimate(
        flops=2 * N * H * H * 6,          # six HxH matmuls worth of MACs
        transcendentals=3 * N * H,        # 2 sigmoids + 1 tanh per element
        bytes_accessed=3 * N * H * a_itemsize + w_bytes,
    )

    out = pl.pallas_call(
        functools.partial(gate_kernel, compute_dtype=compute_dtype),
        out_shape=jax.ShapeDtypeStruct((N, H), x.dtype),
        grid_spec=pltpu.PrefetchScalarGridSpec(
            num_scalar_prefetch=0,
            grid=(pl.cdiv(N, tm_eff),),
            in_specs=[row_spec, row_spec,          # x, y
                      wcat_spec, ucat_spec,        # [Wr|Wz|Wg], [Ur|Uz]
                      ug_spec, b_spec],            # Ug, bz
            out_specs=row_spec,
        ),
        compiler_params=pltpu.CompilerParams(
            dimension_semantics=("parallel",),
            vmem_limit_bytes=vmem_limit),
        cost_estimate=cost,
    )(x2, y2, wcat, ucat, ug, bz)

    return out.reshape(orig_shape)


# ---------------------------------------------------------------------------
# Parameter init + pure-JAX reference (for the correctness check)
# ---------------------------------------------------------------------------
def init_gate_params(key, hidden_size, bias=-2.0, dtype=jnp.float32):
    """Mimics nn.Linear defaults (uniform +-1/sqrt(fan_in)); weights stored (in, out)."""
    bound = 1.0 / (hidden_size ** 0.5)
    keys = jax.random.split(key, 6)

    def w(k):
        return jax.random.uniform(k, (hidden_size, hidden_size),
                                  minval=-bound, maxval=bound, dtype=dtype)

    wr, ur, wz, uz, wg, ug = (w(k) for k in keys)
    bz = jnp.full((hidden_size,), bias, dtype=dtype)  # Wz.bias.fill_(bias)
    return dict(wr=wr, ur=ur, wz=wz, bz=bz, uz=uz, wg=wg, ug=ug)


def gate_reference(x, y, p):
    """Pure-JAX (f32) reference."""
    r = jax.nn.sigmoid(y @ p["wr"] + x @ p["ur"])
    z = jax.nn.sigmoid(y @ p["wz"] + p["bz"] + x @ p["uz"])
    h = jnp.tanh(y @ p["wg"] + (r * x) @ p["ug"])
    return (1.0 - z) * x + z * h


# ---------------------------------------------------------------------------
# Demo / self-test
# ---------------------------------------------------------------------------
if __name__ == "__main__":
    batch, seq, hidden = 2, 8, 128   # hidden = 128 keeps lanes fully dense
    key = jax.random.PRNGKey(0)
    kx, ky, kp = jax.random.split(key, 3)

    x = jax.random.normal(kx, (batch, seq, hidden), dtype=jnp.float32)
    y = jax.random.normal(ky, (batch, seq, hidden), dtype=jnp.float32)
    params = init_gate_params(kp, hidden, bias=-2.0)

    ref = gate_reference(x.reshape(-1, hidden), y.reshape(-1, hidden),
                         params).reshape(x.shape)

    # f32 MXU path — bitwise-close to the reference.
    packed_f32 = pack_gate_params(params, compute_dtype=jnp.float32)
    out_f32 = jax.block_until_ready(gate_forward(x, y, **packed_f32))
    assert out_f32.shape == (batch, seq, hidden)
    assert jnp.allclose(out_f32, ref, atol=1e-5, rtol=1e-5), "f32 mismatch vs reference"

    # bf16 weights (packed/quantized once, outside the hot path), f32 activations.
    packed_bf16 = pack_gate_params(params, compute_dtype=jnp.bfloat16)
    out_bf16 = jax.block_until_ready(gate_forward(x, y, **packed_bf16))
    assert jnp.allclose(out_bf16, ref, atol=1e-1, rtol=1e-1), "bf16 mismatch vs reference"

    # bf16 end-to-end (activations + weights): halves streamed HBM traffic.
    out_bf16_act = jax.block_until_ready(
        gate_forward(x.astype(jnp.bfloat16), y.astype(jnp.bfloat16), **packed_bf16))
    assert out_bf16_act.dtype == jnp.bfloat16
    assert jnp.allclose(out_bf16_act.astype(jnp.float32), ref,
                        atol=2.5e-1, rtol=2.5e-1), "bf16-act mismatch vs reference"

    print("KERNEL_OK")
</pallas_src>

<mosaic_0001>
module attributes {stable_mosaic.version = 11 : i64} {
  func.func @gate_kernel(%arg0: i32, %arg1: memref<8x128xf32, #tpu.memory_space<vmem>>, %arg2: memref<8x128xf32, #tpu.memory_space<vmem>>, %arg3: memref<128x384xf32, #tpu.memory_space<vmem>>, %arg4: memref<128x256xf32, #tpu.memory_space<vmem>>, %arg5: memref<128x128xf32, #tpu.memory_space<vmem>>, %arg6: memref<1x128xf32, #tpu.memory_space<vmem>>, %arg7: memref<8x128xf32, #tpu.memory_space<vmem>>) attributes {dimension_semantics = [#tpu.dimension_semantics<parallel>], iteration_bounds = array<i64: 2>, scalar_prefetch = 0 : i64, scratch_operands = 0 : i64, tpu.core_type = #tpu.core_type<tc>, window_params = [{transform_indices = @transform_0, window_bounds = array<i64: 8, 128>}, {transform_indices = @transform_1, window_bounds = array<i64: 8, 128>}, {pipeline_mode = #tpu.pipeline_mode<synchronous>, transform_indices = @transform_2, window_bounds = array<i64: 128, 384>}, {pipeline_mode = #tpu.pipeline_mode<synchronous>, transform_indices = @transform_3, window_bounds = array<i64: 128, 256>}, {pipeline_mode = #tpu.pipeline_mode<synchronous>, transform_indices = @transform_4, window_bounds = array<i64: 128, 128>}, {pipeline_mode = #tpu.pipeline_mode<synchronous>, transform_indices = @transform_5, window_bounds = array<i64: 1, 128>}, {transform_indices = @transform_6, window_bounds = array<i64: 8, 128>}]} {
    %c0 = arith.constant 0 : index
    %c0_0 = arith.constant 0 : index
    %0 = vector.load %arg1[%c0, %c0_0] : memref<8x128xf32, #tpu.memory_space<vmem>>, vector<8x128xf32>
    %c0_1 = arith.constant 0 : index
    %c0_2 = arith.constant 0 : index
    %1 = vector.load %arg2[%c0_1, %c0_2] : memref<8x128xf32, #tpu.memory_space<vmem>>, vector<8x128xf32>
    %c0_3 = arith.constant 0 : index
    %c0_4 = arith.constant 0 : index
    %2 = vector.load %arg3[%c0_3, %c0_4] : memref<128x384xf32, #tpu.memory_space<vmem>>, vector<128x384xf32>
    %cst = arith.constant dense<0.000000e+00> : vector<8x384xf32>
    %3 = tpu.matmul %1, %2, %cst {dimension_numbers = #tpu.dot_dimension_numbers<[1], [0], [0], [1], [0, 0, 1, 1], [], []>} : vector<8x128xf32>, vector<128x384xf32>, vector<8x384xf32> -> vector<8x384xf32>
    %c0_5 = arith.constant 0 : index
    %c0_6 = arith.constant 0 : index
    %4 = vector.load %arg4[%c0_5, %c0_6] : memref<128x256xf32, #tpu.memory_space<vmem>>, vector<128x256xf32>
    %cst_7 = arith.constant dense<0.000000e+00> : vector<8x256xf32>
    %5 = tpu.matmul %0, %4, %cst_7 {dimension_numbers = #tpu.dot_dimension_numbers<[1], [0], [0], [1], [0, 0, 1, 1], [], []>} : vector<8x128xf32>, vector<128x256xf32>, vector<8x256xf32> -> vector<8x256xf32>
    %6 = vector.extract_strided_slice %3 {offsets = [0, 0], sizes = [8, 128], strides = [1, 1]} : vector<8x384xf32> to vector<8x128xf32>
    %7 = vector.extract_strided_slice %5 {offsets = [0, 0], sizes = [8, 128], strides = [1, 1]} : vector<8x256xf32> to vector<8x128xf32>
    %8 = arith.addf %6, %7 : vector<8x128xf32>
    %9 = arith.negf %8 : vector<8x128xf32>
    %10 = math.exp %9 : vector<8x128xf32>
    %cst_8 = arith.constant 1.000000e+00 : f32
    %11 = vector.broadcast %cst_8 : f32 to vector<8x128xf32>
    %12 = arith.addf %11, %10 : vector<8x128xf32>
    %13 = arith.divf %11, %12 : vector<8x128xf32>
    %14 = vector.extract_strided_slice %3 {offsets = [0, 128], sizes = [8, 128], strides = [1, 1]} : vector<8x384xf32> to vector<8x128xf32>
    %c0_9 = arith.constant 0 : index
    %c0_10 = arith.constant 0 : index
    %15 = vector.load %arg6[%c0_9, %c0_10] : memref<1x128xf32, #tpu.memory_space<vmem>>, vector<1x128xf32>
    %16 = vector.broadcast %15 : vector<1x128xf32> to vector<8x128xf32>
    %17 = arith.addf %14, %16 : vector<8x128xf32>
    %18 = vector.extract_strided_slice %5 {offsets = [0, 128], sizes = [8, 128], strides = [1, 1]} : vector<8x256xf32> to vector<8x128xf32>
    %19 = arith.addf %17, %18 : vector<8x128xf32>
    %20 = arith.negf %19 : vector<8x128xf32>
    %21 = math.exp %20 : vector<8x128xf32>
    %cst_11 = arith.constant 1.000000e+00 : f32
    %22 = vector.broadcast %cst_11 : f32 to vector<8x128xf32>
    %23 = arith.addf %22, %21 : vector<8x128xf32>
    %24 = arith.divf %22, %23 : vector<8x128xf32>
    %25 = arith.mulf %13, %0 : vector<8x128xf32>
    %26 = vector.extract_strided_slice %3 {offsets = [0, 256], sizes = [8, 128], strides = [1, 1]} : vector<8x384xf32> to vector<8x128xf32>
    %c0_12 = arith.constant 0 : index
    %c0_13 = arith.constant 0 : index
    %27 = vector.load %arg5[%c0_12, %c0_13] : memref<128x128xf32, #tpu.memory_space<vmem>>, vector<128x128xf32>
    %cst_14 = arith.constant dense<0.000000e+00> : vector<8x128xf32>
    %28 = tpu.matmul %25, %27, %cst_14 {dimension_numbers = #tpu.dot_dimension_numbers<[1], [0], [0], [1], [0, 0, 1, 1], [], []>} : vector<8x128xf32>, vector<128x128xf32>, vector<8x128xf32> -> vector<8x128xf32>
    %29 = arith.addf %26, %28 : vector<8x128xf32>
    %30 = math.tanh %29 : vector<8x128xf32>
    %31 = arith.subf %30, %0 : vector<8x128xf32>
    %32 = arith.mulf %24, %31 : vector<8x128xf32>
    %33 = arith.addf %0, %32 : vector<8x128xf32>
    %c0_15 = arith.constant 0 : index
    %c0_16 = arith.constant 0 : index
    %34 = vector.load %arg7[%c0_15, %c0_16] : memref<8x128xf32, #tpu.memory_space<vmem>>, vector<8x128xf32>
    tpu.vector_store %arg7[%c0_15, %c0_16], %33 {strides = array<i32>} : memref<8x128xf32, #tpu.memory_space<vmem>>, vector<8x128xf32>,
    return
  }
  func.func @transform_0(%arg0: i32) -> (i32, i32) {
    %c0_i32 = arith.constant 0 : i32
    %c0_i32_0 = arith.constant 0 : i32
    return %arg0, %c0_i32 : i32, i32
  }
  func.func @transform_1(%arg0: i32) -> (i32, i32) {
    %c0_i32 = arith.constant 0 : i32
    %c0_i32_0 = arith.constant 0 : i32
    return %arg0, %c0_i32 : i32, i32
  }
  func.func @transform_2(%arg0: i32) -> (i32, i32) {
    %c0_i32 = arith.constant 0 : i32
    %c0_i32_0 = arith.constant 0 : i32
    %c0_i32_1 = arith.constant 0 : i32
    return %c0_i32, %c0_i32_0 : i32, i32
  }
  func.func @transform_3(%arg0: i32) -> (i32, i32) {
    %c0_i32 = arith.constant 0 : i32
    %c0_i32_0 = arith.constant 0 : i32
    %c0_i32_1 = arith.constant 0 : i32
    return %c0_i32, %c0_i32_0 : i32, i32
  }
  func.func @transform_4(%arg0: i32) -> (i32, i32) {
    %c0_i32 = arith.constant 0 : i32
    %c0_i32_0 = arith.constant 0 : i32
    %c0_i32_1 = arith.constant 0 : i32
    return %c0_i32, %c0_i32_0 : i32, i32
  }
  func.func @transform_5(%arg0: i32) -> (i32, i32) {
    %c0_i32 = arith.constant 0 : i32
    %c0_i32_0 = arith.constant 0 : i32
    %c0_i32_1 = arith.constant 0 : i32
    return %c0_i32, %c0_i32_0 : i32, i32
  }
  func.func @transform_6(%arg0: i32) -> (i32, i32) {
    %c0_i32 = arith.constant 0 : i32
    %c0_i32_0 = arith.constant 0 : i32
    return %arg0, %c0_i32 : i32, i32
  }
}

</mosaic_0001>

<llo_original>
// kernel: gate_forward.1
$region0: #{gate_forward.1}
  #allocation0 [shape = 'u32[]', space=smem, size = 0x4, offset = 0x4, fixed_abs, tag = 'smem constant byte address 0x4 - core index']
  #allocation1 [shape = 'u32[72,128]{1,0:T(1,128)}', space=vmem, size = 0x9000, scoped, tag = 'internal scratch']
  %s0 = inlined_call_operand.hbm [shape: f32[16,128], index: 0, kind: input, shape index: {}]
  %s1 = inlined_call_operand.hbm [shape: f32[16,128], index: 1, kind: input, shape index: {}]
  %s2 = inlined_call_operand.hbm [shape: f32[128,384], index: 2, kind: input, shape index: {}]
  %s3 = inlined_call_operand.hbm [shape: f32[128,256], index: 3, kind: input, shape index: {}]
  %s4 = inlined_call_operand.hbm [shape: f32[128,128], index: 4, kind: input, shape index: {}]
  %s5 = inlined_call_operand.vmem [shape: f32[1,128], index: 5, kind: input, shape index: {}]
  %s6 = inlined_call_operand.hbm [shape: f32[16,128], index: 6, kind: output, shape index: {}]
  %s7 = sld [smem:[#allocation0]]
  $region77: #{gate_forward.1} parent=0
    _
  %s9 = ssub.s32 1, %s7
  %s10 = scalar_select 0, %s9, %s7
  $region1: #{gate_forward.1} parent=0
    #allocation2 [shape = 'u8[8192]{0}', space=vmem, size = 0x2000, scoped, tag = 'input window, operand 0']
    #allocation3 [shape = 's32[2]{0}', space=sflag, size = 0x8, scoped, tag = 'scoped memory for gate_forward.1']
    #allocation4 [shape = 's32[2]{0}', space=sflag, size = 0x8, scoped, tag = 'scoped memory for gate_forward.1']
    #allocation5 [shape = 'u8[8192]{0}', space=vmem, size = 0x2000, scoped, tag = 'input window, operand 1']
    #allocation6 [shape = 's32[2]{0}', space=sflag, size = 0x8, scoped, tag = 'scoped memory for gate_forward.1']
    #allocation7 [shape = 'u8[196608]{0}', space=vmem, size = 0x30000, scoped, tag = 'input window, operand 2, single buffered']
    #allocation8 [shape = 'u8[131072]{0}', space=vmem, size = 0x20000, scoped, tag = 'input window, operand 3, single buffered']
    #allocation9 [shape = 's32[1]{0}', space=sflag, size = 0x4, scoped, tag = 'scoped memory for gate_forward.1']
    #allocation10 [shape = 'u8[65536]{0}', space=vmem, size = 0x10000, scoped, tag = 'input window, operand 4, single buffered']
    #allocation11 [shape = 'u8[8192]{0}', space=vmem, size = 0x2000, scoped, tag = 'output window, operand 0']
    %11 = vsyncpa [#allocation3], 0
    %s12 = scalar_lea.sflag [#allocation3], 1
    %13 = vsyncpa %s12, 0
    %14 = vsyncpa [#allocation6], 0
    %s15 = scalar_lea.sflag [#allocation6], 1
    %16 = vsyncpa %s15, 0
    %17 = vsyncpa [#allocation9], 0
    %18 = vsyncpa [#allocation4], 0
    %s19 = scalar_lea.sflag [#allocation4], 1
    %20 = vsyncpa %s19, 0
    loop: start=0, step=1, limit=4
    $region2: #{gate_forward.1} parent=1 // loop_pre_header
      _
    $region3: #{gate_forward.1} parent=1 // loop_header
      %s22 = sphi 0, %s26
      %p23 = scmp.ge.s32.totalorder %s22, 4
      %s32 = sphi 0, %s34
      %s35 = sphi 0, %s32
      %s36 = sphi 0, %s35
      %s52 = sphi 0, %s36
      %s58 = sphi 0, %s60
      %s61 = sphi 0, %s58
      %s62 = sphi 0, %s61
      %s78 = sphi 0, %s62
      %s82 = sphi 0, %s82
      %s84 = sphi 0, %s82
      %s85 = sphi 0, %s84
      %s99 = sphi 0, %s85
      %s103 = sphi 0, %s103
      %s105 = sphi 0, %s103
      %s106 = sphi 0, %s105
      %s120 = sphi 0, %s106
      %s124 = sphi 0, %s124
      %s126 = sphi 0, %s124
      %s127 = sphi 0, %s126
      %s141 = sphi 0, %s127
      %s145 = sphi 0, %s145
      %s147 = sphi 0, %s145
      %s148 = sphi 0, %s147
      %s162 = sphi 0, %s148
      %s168 = sphi 0, %s170
      %s171 = sphi 0, %s168
      %s172 = sphi 0, %s171
      %s188 = sphi 0, %s172
    $region4: #{gate_forward.1} parent=1 // loop_header_branch
      %25 = sbr.rel (%p23) target = $region8
    $region5: #{gate_forward.1} parent=1 // loop_body
      %s27 = ssub.s32 %s22, 1
      %s28 = ssub.s32 %s22, 2
      %s29 = sadd.s32 %s22, 1
      %s30 = ssub.s32 %s22, %s29
      %p31 = scmp.eq.s32.totalorder %s30, 0
      %s33 = sadd.s32 %s32, 1
      %s34 = scalar_select %p31, %s32, %s33
      %p37 = pneg %p31
      %p38 = scmp.eq.s32.totalorder %s22, 1
      %p39 = por %p37, %p38
      %p40 = scmp.ne.s32.totalorder %s32, %s35
      %p41 = scmp.eq.s32.totalorder %s22, 0
      %p42 = por %p40, %p41
      %p43 = scmp.ne.s32.totalorder %s32, %s35
      %p44 = scmp.eq.s32.totalorder %s27, 1
      %p45 = por %p43, %p44
      %p46 = scmp.ne.s32.totalorder %s35, %s36
      %p47 = scmp.eq.s32.totalorder %s27, 0
      %p48 = por %p46, %p47
      %p49 = scmp.ne.s32.totalorder %s35, %s36
      %p50 = scmp.eq.s32.totalorder %s28, 1
      %p51 = por %p49, %p50
      %p53 = scmp.ne.s32.totalorder %s36, %s52
      %p54 = scmp.eq.s32.totalorder %s28, 0
      %p55 = por %p53, %p54
      %s56 = ssub.s32 %s22, %s29
      %p57 = scmp.eq.s32.totalorder %s56, 0
      %s59 = sadd.s32 %s58, 1
      %s60 = scalar_select %p57, %s58, %s59
      %p63 = pneg %p57
      %p64 = scmp.eq.s32.totalorder %s22, 1
      %p65 = por %p63, %p64
      %p66 = scmp.ne.s32.totalorder %s58, %s61
      %p67 = scmp.eq.s32.totalorder %s22, 0
      %p68 = por %p66, %p67
      %p69 = scmp.ne.s32.totalorder %s58, %s61
      %p70 = scmp.eq.s32.totalorder %s27, 1
      %p71 = por %p69, %p70
      %p72 = scmp.ne.s32.totalorder %s61, %s62
      %p73 = scmp.eq.s32.totalorder %s27, 0
      %p74 = por %p72, %p73
      %p75 = scmp.ne.s32.totalorder %s61, %s62
      %p76 = scmp.eq.s32.totalorder %s28, 1
      %p77 = por %p75, %p76
      %p79 = scmp.ne.s32.totalorder %s62, %s78
      %p80 = scmp.eq.s32.totalorder %s28, 0
      %p81 = por %p79, %p80
      %s83 = sadd.s32 %s82, 1
      %p86 = scmp.eq.s32.totalorder %s22, 1
      %p87 = scmp.ne.s32.totalorder %s82, %s84
      %p88 = scmp.eq.s32.totalorder %s22, 0
      %p89 = por %p87, %p88
      %p90 = scmp.ne.s32.totalorder %s82, %s84
      %p91 = scmp.eq.s32.totalorder %s27, 1
      %p92 = por %p90, %p91
      %p93 = scmp.ne.s32.totalorder %s84, %s85
      %p94 = scmp.eq.s32.totalorder %s27, 0
      %p95 = por %p93, %p94
      %p96 = scmp.ne.s32.totalorder %s84, %s85
      %p97 = scmp.eq.s32.totalorder %s28, 1
      %p98 = por %p96, %p97
      %p100 = scmp.ne.s32.totalorder %s85, %s99
      %p101 = scmp.eq.s32.totalorder %s28, 0
      %p102 = por %p100, %p101
      %s104 = sadd.s32 %s103, 1
      %p107 = scmp.eq.s32.totalorder %s22, 1
      %p108 = scmp.ne.s32.totalorder %s103, %s105
      %p109 = scmp.eq.s32.totalorder %s22, 0
      %p110 = por %p108, %p109
      %p111 = scmp.ne.s32.totalorder %s103, %s105
      %p112 = scmp.eq.s32.totalorder %s27, 1
      %p113 = por %p111, %p112
      %p114 = scmp.ne.s32.totalorder %s105, %s106
      %p115 = scmp.eq.s32.totalorder %s27, 0
      %p116 = por %p114, %p115
      %p117 = scmp.ne.s32.totalorder %s105, %s106
      %p118 = scmp.eq.s32.totalorder %s28, 1
      %p119 = por %p117, %p118
      %p121 = scmp.ne.s32.totalorder %s106, %s120
      %p122 = scmp.eq.s32.totalorder %s28, 0
      %p123 = por %p121, %p122
      %s125 = sadd.s32 %s124, 1
      %p128 = scmp.eq.s32.totalorder %s22, 1
      %p129 = scmp.ne.s32.totalorder %s124, %s126
      %p130 = scmp.eq.s32.totalorder %s22, 0
      %p131 = por %p129, %p130
      %p132 = scmp.ne.s32.totalorder %s124, %s126
      %p133 = scmp.eq.s32.totalorder %s27, 1
      %p134 = por %p132, %p133
      %p135 = scmp.ne.s32.totalorder %s126, %s127
      %p136 = scmp.eq.s32.totalorder %s27, 0
      %p137 = por %p135, %p136
      %p138 = scmp.ne.s32.totalorder %s126, %s127
      %p139 = scmp.eq.s32.totalorder %s28, 1
      %p140 = por %p138, %p139
      %p142 = scmp.ne.s32.totalorder %s127, %s141
      %p143 = scmp.eq.s32.totalorder %s28, 0
      %p144 = por %p142, %p143
      %s146 = sadd.s32 %s145, 1
      %p149 = scmp.eq.s32.totalorder %s22, 1
      %p150 = scmp.ne.s32.totalorder %s145, %s147
      %p151 = scmp.eq.s32.totalorder %s22, 0
      %p152 = por %p150, %p151
      %p153 = scmp.ne.s32.totalorder %s145, %s147
      %p154 = scmp.eq.s32.totalorder %s27, 1
      %p155 = por %p153, %p154
      %p156 = scmp.ne.s32.totalorder %s147, %s148
      %p157 = scmp.eq.s32.totalorder %s27, 0
      %p158 = por %p156, %p157
      %p159 = scmp.ne.s32.totalorder %s147, %s148
      %p160 = scmp.eq.s32.totalorder %s28, 1
      %p161 = por %p159, %p160
      %p163 = scmp.ne.s32.totalorder %s148, %s162
      %p164 = scmp.eq.s32.totalorder %s28, 0
      %p165 = por %p163, %p164
      %s166 = ssub.s32 %s22, %s29
      %p167 = scmp.eq.s32.totalorder %s166, 0
      %s169 = sadd.s32 %s168, 1
      %s170 = scalar_select %p167, %s168, %s169
      %p173 = pneg %p167
      %p174 = scmp.eq.s32.totalorder %s22, 1
      %p175 = por %p173, %p174
      %p176 = scmp.ne.s32.totalorder %s168, %s171
      %p177 = scmp.eq.s32.totalorder %s22, 0
      %p178 = por %p176, %p177
      %p179 = scmp.ne.s32.totalorder %s168, %s171
      %p180 = scmp.eq.s32.totalorder %s27, 1
      %p181 = por %p179, %p180
      %p182 = scmp.ne.s32.totalorder %s171, %s172
      %p183 = scmp.eq.s32.totalorder %s27, 0
      %p184 = por %p182, %p183
      %p185 = scmp.ne.s32.totalorder %s171, %s172
      %p186 = scmp.eq.s32.totalorder %s28, 1
      %p187 = por %p185, %p186
      %p189 = scmp.ne.s32.totalorder %s172, %s188
      %p190 = scmp.eq.s32.totalorder %s28, 0
      %p191 = por %p189, %p190
      %p192 = scmp.le.s32.totalorder 1, %s22
      %p193 = scmp.lt.s32.totalorder %s22, 3
      %p194 = pnand %p192, %p193
      %p195 = pneg %p194
      // Predicated region
      $region9: #{gate_forward.1} parent=5 // pred_check
        _
      $region10: #{gate_forward.1} parent=5 // pred_check_branch
        %197 = sbr.rel (%p194) target = $region12
      $region11: #{gate_forward.1} parent=5 // pred_region
        %s198 = ssub.s32 %s22, 1
        // Predicated region
        $region13: #{gate_forward.1} parent=11 // pred_check
          %p199 = pneg %p95
        $region14: #{gate_forward.1} parent=11 // pred_check_branch
          %201 = sbr.rel (%p199) target = $region16
        $region15: #{gate_forward.1} parent=11 // pred_region
          %203 = vsyncadd [#allocation6], 0
          %s204 = sshll.u32 %s2, 4
          %s205 = int_to_ptr.hbm [resolvable:$true] %s204
          %s206 = sshll.u32 [#allocation7], 4
          %s207 = int_to_ptr.vmem [resolvable:$true] %s206
          %212 = dma.hbm_to_vmem [thread:$0]  %s205, 6144, %s207, [#allocation6], 384, 384, 24
        $region16: #{gate_forward.1} parent=11 // pred_fallthru
          _
        // Predicated region
        $region17: #{gate_forward.1} parent=11 // pred_check
          %p213 = pneg %p116
        $region18: #{gate_forward.1} parent=11 // pred_check_branch
          %215 = sbr.rel (%p213) target = $region20
        $region19: #{gate_forward.1} parent=11 // pred_region
          %217 = vsyncadd [#allocation9], 0
          %s218 = sshll.u32 %s3, 4
          %s219 = int_to_ptr.hbm [resolvable:$true] %s218
          %s220 = sshll.u32 [#allocation8], 4
          %s221 = int_to_ptr.vmem [resolvable:$true] %s220
          %226 = dma.hbm_to_vmem [thread:$0]  %s219, 4096, %s221, [#allocation9], 256, 256, 16
        $region20: #{gate_forward.1} parent=11 // pred_fallthru
          _
        // Predicated region
        $region21: #{gate_forward.1} parent=11 // pred_check
          %p227 = pneg %p137
        $region22: #{gate_forward.1} parent=11 // pred_check_branch
          %229 = sbr.rel (%p227) target = $region24
        $region23: #{gate_forward.1} parent=11 // pred_region
          %231 = vsyncadd [#allocation9], 0
          %s232 = sshll.u32 %s4, 4
          %s233 = int_to_ptr.hbm [resolvable:$true] %s232
          %s234 = sshll.u32 [#allocation10], 4
          %s235 = int_to_ptr.vmem [resolvable:$true] %s234
          %240 = dma.hbm_to_vmem [thread:$0]  %s233, 2048, %s235, [#allocation9], 128, 128, 8
        $region24: #{gate_forward.1} parent=11 // pred_fallthru
          _
        // Predicated region
        $region25: #{gate_forward.1} parent=11 // pred_check
          %p241 = pneg %p158
        $region26: #{gate_forward.1} parent=11 // pred_check_branch
          %243 = sbr.rel (%p241) target = $region28
        $region27: #{gate_forward.1} parent=11 // pred_region
          _
        $region28: #{gate_forward.1} parent=11 // pred_fallthru
          _
      $region12: #{gate_forward.1} parent=5 // pred_fallthru
        _
      %p244 = scmp.lt.s32.totalorder %s22, 2
      // Predicated region
      $region29: #{gate_forward.1} parent=5 // pred_check
        %p245 = pneg %p244
      $region30: #{gate_forward.1} parent=5 // pred_check_branch
        %247 = sbr.rel (%p245) target = $region32
      $region31: #{gate_forward.1} parent=5 // pred_region
        // Predicated region
        $region33: #{gate_forward.1} parent=31 // pred_check
          %p248 = pneg %p42
        $region34: #{gate_forward.1} parent=31 // pred_check_branch
          %250 = sbr.rel (%p248) target = $region36
        $region35: #{gate_forward.1} parent=31 // pred_region
          %s251 = sand.u32 %s32, 1
          %s252 = scalar_lea.sflag [#allocation3], %s251
          %s253 = sand.u32 %s32, 1
          %s254 = smul.addr %s253, 8
          %s255 = scalar_lea.vmem [#allocation2], %s254
          %257 = vsyncadd %s252, 0
          %s258 = smul.addr %s22, 8
          %s259 = scalar_lea.hbm %s0, %s258
          %s261 = sshll.u32 %s259, 4
          %s262 = int_to_ptr.hbm [resolvable:$true] %s261
          %s263 = sshll.u32 %s255, 4
          %s264 = int_to_ptr.vmem [resolvable:$true] %s263
          %266 = dma.hbm_to_vmem [thread:$0]  %s262, 128, %s264, %s252
        $region36: #{gate_forward.1} parent=31 // pred_fallthru
          _
        // Predicated region
        $region37: #{gate_forward.1} parent=31 // pred_check
          %p267 = pneg %p68
        $region38: #{gate_forward.1} parent=31 // pred_check_branch
          %269 = sbr.rel (%p267) target = $region40
        $region39: #{gate_forward.1} parent=31 // pred_region
          %s270 = sand.u32 %s22, 1
          %s271 = scalar_lea.sflag [#allocation6], %s270
          %s272 = sand.u32 %s58, 1
          %s273 = smul.addr %s272, 8
          %s274 = scalar_lea.vmem [#allocation5], %s273
          %276 = vsyncadd %s271, 0
          %s277 = smul.addr %s22, 8
          %s278 = scalar_lea.hbm %s1, %s277
          %s280 = sshll.u32 %s278, 4
          %s281 = int_to_ptr.hbm [resolvable:$true] %s280
          %s282 = sshll.u32 %s274, 4
          %s283 = int_to_ptr.vmem [resolvable:$true] %s282
          %285 = dma.hbm_to_vmem [thread:$0]  %s281, 128, %s283, %s271
        $region40: #{gate_forward.1} parent=31 // pred_fallthru
          _
      $region32: #{gate_forward.1} parent=5 // pred_fallthru
        _
      %p286 = scmp.le.s32.totalorder 1, %s22
      %p287 = scmp.lt.s32.totalorder %s22, 3
      %p288 = pnand %p286, %p287
      %p289 = pneg %p288
      // Predicated region
      $region41: #{gate_forward.1} parent=5 // pred_check
        _
      $region42: #{gate_forward.1} parent=5 // pred_check_branch
        %291 = sbr.rel (%p288) target = $region44
      $region43: #{gate_forward.1} parent=5 // pred_region
        %s292 = ssub.s32 %s22, 1
        %s293 = sand.u32 %s35, 1
        %s294 = scalar_lea.sflag [#allocation3], %s293
        %s295 = sand.u32 %s35, 1
        %s296 = smul.addr %s295, 8
        %s297 = scalar_lea.vmem [#allocation2], %s296
        // Predicated region
        $region45: #{gate_forward.1} parent=43 // pred_check
          %p298 = pneg %p48
        $region46: #{gate_forward.1} parent=43 // pred_check_branch
          %300 = sbr.rel (%p298) target = $region48
        $region47: #{gate_forward.1} parent=43 // pred_region
          %302 = dma.done %s294, 128
        $region48: #{gate_forward.1} parent=43 // pred_fallthru
          _
        %s303 = sand.u32 %s27, 1
        %s304 = scalar_lea.sflag [#allocation6], %s303
        %s305 = sand.u32 %s61, 1
        %s306 = smul.addr %s305, 8
        %s307 = scalar_lea.vmem [#allocation5], %s306
        // Predicated region
        $region49: #{gate_forward.1} parent=43 // pred_check
          %p308 = pneg %p74
        $region50: #{gate_forward.1} parent=43 // pred_check_branch
          %310 = sbr.rel (%p308) target = $region52
        $region51: #{gate_forward.1} parent=43 // pred_region
          %312 = dma.done %s304, 128
        $region52: #{gate_forward.1} parent=43 // pred_fallthru
          _
        // Predicated region
        $region53: #{gate_forward.1} parent=43 // pred_check
          %p313 = pneg %p95
        $region54: #{gate_forward.1} parent=43 // pred_check_branch
          %315 = sbr.rel (%p313) target = $region56
        $region55: #{gate_forward.1} parent=43 // pred_region
          %317 = dma.done [#allocation6], 6144
        $region56: #{gate_forward.1} parent=43 // pred_fallthru
          _
        // Predicated region
        $region57: #{gate_forward.1} parent=43 // pred_check
          %p318 = pneg %p116
        $region58: #{gate_forward.1} parent=43 // pred_check_branch
          %320 = sbr.rel (%p318) target = $region60
        $region59: #{gate_forward.1} parent=43 // pred_region
          %322 = dma.done [#allocation9], 4096
        $region60: #{gate_forward.1} parent=43 // pred_fallthru
          _
        // Predicated region
        $region61: #{gate_forward.1} parent=43 // pred_check
          %p323 = pneg %p137
        $region62: #{gate_forward.1} parent=43 // pred_check_branch
          %325 = sbr.rel (%p323) target = $region64
        $region63: #{gate_forward.1} parent=43 // pred_region
          %327 = dma.done [#allocation9], 2048
        $region64: #{gate_forward.1} parent=43 // pred_fallthru
          _
        %s328 = sand.u32 %s35, 1
        %s329 = scalar_lea.sflag [#allocation3], %s328
        %s330 = sand.u32 %s35, 1
        %s331 = smul.addr %s330, 8
        %s332 = scalar_lea.vmem [#allocation2], %s331
        %p333 = pneg %p48
        %p334 = pneg %p45
        %s335 = sand.u32 %s27, 1
        %s336 = scalar_lea.sflag [#allocation6], %s335
        %s337 = sand.u32 %s61, 1
        %s338 = smul.addr %s337, 8
        %s339 = scalar_lea.vmem [#allocation5], %s338
        %p340 = pneg %p74
        %p341 = pneg %p71
        %p342 = pneg %p95
        %p343 = pneg %p92
        %p344 = pneg %p116
        %p345 = pneg %p113
        %p346 = pneg %p137
        %p347 = pneg %p134
        %p348 = pneg %p158
        %p349 = pneg %p155
        %p350 = pneg %p184
        %p351 = pneg %p181
        %s352 = sand.u32 %s171, 1
        %s353 = scalar_lea.sflag [#allocation4], %s352
        %s354 = sand.u32 %s171, 1
        %s355 = smul.addr %s354, 8
        %s356 = scalar_lea.vmem [#allocation11], %s355
        %v357 = vld [vmem:[%s297] sm:$0xff]
        %v358 = vld [vmem:[%s307] sm:$0xff]
        %v359 = vld [vmem:[#allocation7] sm:$0xff]
        %v360 = vld [vmem:[#allocation7 + $0x8] sm:$0xff]
        %v361 = vld [vmem:[#allocation7 + $0x10] sm:$0xff]
        %v362 = vld [vmem:[#allocation7 + $0x18] sm:$0xff]
        %v363 = vld [vmem:[#allocation7 + $0x20] sm:$0xff]
        %v364 = vld [vmem:[#allocation7 + $0x28] sm:$0xff]
        %v365 = vld [vmem:[#allocation7 + $0x30] sm:$0xff]
        %v366 = vld [vmem:[#allocation7 + $0x38] sm:$0xff]
        %v367 = vld [vmem:[#allocation7 + $0x40] sm:$0xff]
        %v368 = vld [vmem:[#allocation7 + $0x48] sm:$0xff]
        %v369 = vld [vmem:[#allocation7 + $0x50] sm:$0xff]
        %v370 = vld [vmem:[#allocation7 + $0x58] sm:$0xff]
        %v371 = vld [vmem:[#allocation7 + $0x60] sm:$0xff]
        %v372 = vld [vmem:[#allocation7 + $0x68] sm:$0xff]
        %v373 = vld [vmem:[#allocation7 + $0x70] sm:$0xff]
        %v374 = vld [vmem:[#allocation7 + $0x78] sm:$0xff]
        %v375 = vld [vmem:[#allocation7 + $0x80] sm:$0xff]
        %v376 = vld [vmem:[#allocation7 + $0x88] sm:$0xff]
        %v377 = vld [vmem:[#allocation7 + $0x90] sm:$0xff]
        %v378 = vld [vmem:[#allocation7 + $0x98] sm:$0xff]
        %v379 = vld [vmem:[#allocation7 + $0xa0] sm:$0xff]
        %v380 = vld [vmem:[#allocation7 + $0xa8] sm:$0xff]
        %v381 = vld [vmem:[#allocation7 + $0xb0] sm:$0xff]
        %v382 = vld [vmem:[#allocation7 + $0xb8] sm:$0xff]
        %v383 = vld [vmem:[#allocation7 + $0xc0] sm:$0xff]
        %v384 = vld [vmem:[#allocation7 + $0xc8] sm:$0xff]
        %v385 = vld [vmem:[#allocation7 + $0xd0] sm:$0xff]
        %v386 = vld [vmem:[#allocation7 + $0xd8] sm:$0xff]
        %v387 = vld [vmem:[#allocation7 + $0xe0] sm:$0xff]
        %v388 = vld [vmem:[#allocation7 + $0xe8] sm:$0xff]
        %v389 = vld [vmem:[#allocation7 + $0xf0] sm:$0xff]
        %v390 = vld [vmem:[#allocation7 + $0xf8] sm:$0xff]
        %v391 = vld [vmem:[#allocation7 + $0x100] sm:$0xff]
        %v392 = vld [vmem:[#allocation7 + $0x108] sm:$0xff]
        %v393 = vld [vmem:[#allocation7 + $0x110] sm:$0xff]
        %v394 = vld [vmem:[#allocation7 + $0x118] sm:$0xff]
        %v395 = vld [vmem:[#allocation7 + $0x120] sm:$0xff]
        %v396 = vld [vmem:[#allocation7 + $0x128] sm:$0xff]
        %v397 = vld [vmem:[#allocation7 + $0x130] sm:$0xff]
        %v398 = vld [vmem:[#allocation7 + $0x138] sm:$0xff]
        %v399 = vld [vmem:[#allocation7 + $0x140] sm:$0xff]
        %v400 = vld [vmem:[#allocation7 + $0x148] sm:$0xff]
        %v401 = vld [vmem:[#allocation7 + $0x150] sm:$0xff]
        %v402 = vld [vmem:[#allocation7 + $0x158] sm:$0xff]
        %v403 = vld [vmem:[#allocation7 + $0x160] sm:$0xff]
        %v404 = vld [vmem:[#allocation7 + $0x168] sm:$0xff]
        %v405 = vld [vmem:[#allocation7 + $0x170] sm:$0xff]
        %v406 = vld [vmem:[#allocation7 + $0x178] sm:$0xff]
        %407 = vmatpush.msra.mxu0 %v404
        %408 = vmatpush.msra.mxu0 %v401
        %409 = vmatpush.msra.mxu0 %v398
        %410 = vmatpush.msra.mxu0 %v395
        %411 = vmatpush.msra.mxu0 %v392
        %412 = vmatpush.msra.mxu0 %v389
        %413 = vmatpush.msra.mxu0 %v386
        %414 = vmatpush.msra.mxu0 %v383
        %415 = vmatpush.msra.mxu0 %v380
        %416 = vmatpush.msra.mxu0 %v377
        %417 = vmatpush.msra.mxu0 %v374
        %418 = vmatpush.msra.mxu0 %v371
        %419 = vmatpush.msra.mxu0 %v368
        %420 = vmatpush.msra.mxu0 %v365
        %421 = vmatpush.msra.mxu0 %v362
        %422 = vmatpush.msra.mxu0 %v359
        %423 = vmatmul.f32.gmra.mxu0 %v358
        %v424 = vpop.f32.mrf.mxu0
        %v425 = vadd.f32 0.0, %v424
        %426 = vdwg.mxu0
        %427 = vmatpush.msra.mxu0 %v405
        %428 = vmatpush.msra.mxu0 %v402
        %429 = vmatpush.msra.mxu0 %v399
        %430 = vmatpush.msra.mxu0 %v396
        %431 = vmatpush.msra.mxu0 %v393
        %432 = vmatpush.msra.mxu0 %v390
        %433 = vmatpush.msra.mxu0 %v387
        %434 = vmatpush.msra.mxu0 %v384
        %435 = vmatpush.msra.mxu0 %v381
        %436 = vmatpush.msra.mxu0 %v378
        %437 = vmatpush.msra.mxu0 %v375
        %438 = vmatpush.msra.mxu0 %v372
        %439 = vmatpush.msra.mxu0 %v369
        %440 = vmatpush.msra.mxu0 %v366
        %441 = vmatpush.msra.mxu0 %v363
        %442 = vmatpush.msra.mxu0 %v360
        %443 = vmatmul.f32.gmra.mxu0 %v358
        %v444 = vpop.f32.mrf.mxu0
        %v445 = vadd.f32 0.0, %v444
        %446 = vdwg.mxu0
        %447 = vmatpush.msra.mxu0 %v406
        %448 = vmatpush.msra.mxu0 %v403
        %449 = vmatpush.msra.mxu0 %v400
        %450 = vmatpush.msra.mxu0 %v397
        %451 = vmatpush.msra.mxu0 %v394
        %452 = vmatpush.msra.mxu0 %v391
        %453 = vmatpush.msra.mxu0 %v388
        %454 = vmatpush.msra.mxu0 %v385
        %455 = vmatpush.msra.mxu0 %v382
        %456 = vmatpush.msra.mxu0 %v379
        %457 = vmatpush.msra.mxu0 %v376
        %458 = vmatpush.msra.mxu0 %v373
        %459 = vmatpush.msra.mxu0 %v370
        %460 = vmatpush.msra.mxu0 %v367
        %461 = vmatpush.msra.mxu0 %v364
        %462 = vmatpush.msra.mxu0 %v361
        %463 = vmatmul.f32.gmra.mxu0 %v358
        %v464 = vpop.f32.mrf.mxu0
        %v465 = vadd.f32 0.0, %v464
        %466 = vdwg.mxu0
        %v467 = vld [vmem:[#allocation8] sm:$0xff]
        %v468 = vld [vmem:[#allocation8 + $0x8] sm:$0xff]
        %v469 = vld [vmem:[#allocation8 + $0x10] sm:$0xff]
        %v470 = vld [vmem:[#allocation8 + $0x18] sm:$0xff]
        %v471 = vld [vmem:[#allocation8 + $0x20] sm:$0xff]
        %v472 = vld [vmem:[#allocation8 + $0x28] sm:$0xff]
        %v473 = vld [vmem:[#allocation8 + $0x30] sm:$0xff]
        %v474 = vld [vmem:[#allocation8 + $0x38] sm:$0xff]
        %v475 = vld [vmem:[#allocation8 + $0x40] sm:$0xff]
        %v476 = vld [vmem:[#allocation8 + $0x48] sm:$0xff]
        %v477 = vld [vmem:[#allocation8 + $0x50] sm:$0xff]
        %v478 = vld [vmem:[#allocation8 + $0x58] sm:$0xff]
        %v479 = vld [vmem:[#allocation8 + $0x60] sm:$0xff]
        %v480 = vld [vmem:[#allocation8 + $0x68] sm:$0xff]
        %v481 = vld [vmem:[#allocation8 + $0x70] sm:$0xff]
        %v482 = vld [vmem:[#allocation8 + $0x78] sm:$0xff]
        %v483 = vld [vmem:[#allocation8 + $0x80] sm:$0xff]
        %v484 = vld [vmem:[#allocation8 + $0x88] sm:$0xff]
        %v485 = vld [vmem:[#allocation8 + $0x90] sm:$0xff]
        %v486 = vld [vmem:[#allocation8 + $0x98] sm:$0xff]
        %v487 = vld [vmem:[#allocation8 + $0xa0] sm:$0xff]
        %v488 = vld [vmem:[#allocation8 + $0xa8] sm:$0xff]
        %v489 = vld [vmem:[#allocation8 + $0xb0] sm:$0xff]
        %v490 = vld [vmem:[#allocation8 + $0xb8] sm:$0xff]
        %v491 = vld [vmem:[#allocation8 + $0xc0] sm:$0xff]
        %v492 = vld [vmem:[#allocation8 + $0xc8] sm:$0xff]
        %v493 = vld [vmem:[#allocation8 + $0xd0] sm:$0xff]
        %v494 = vld [vmem:[#allocation8 + $0xd8] sm:$0xff]
        %v495 = vld [vmem:[#allocation8 + $0xe0] sm:$0xff]
        %v496 = vld [vmem:[#allocation8 + $0xe8] sm:$0xff]
        %v497 = vld [vmem:[#allocation8 + $0xf0] sm:$0xff]
        %v498 = vld [vmem:[#allocation8 + $0xf8] sm:$0xff]
        %499 = vmatpush.msra.mxu0 %v497
        %500 = vmatpush.msra.mxu0 %v495
        %501 = vmatpush.msra.mxu0 %v493
        %502 = vmatpush.msra.mxu0 %v491
        %503 = vmatpush.msra.mxu0 %v489
        %504 = vmatpush.msra.mxu0 %v487
        %505 = vmatpush.msra.mxu0 %v485
        %506 = vmatpush.msra.mxu0 %v483
        %507 = vmatpush.msra.mxu0 %v481
        %508 = vmatpush.msra.mxu0 %v479
        %509 = vmatpush.msra.mxu0 %v477
        %510 = vmatpush.msra.mxu0 %v475
        %511 = vmatpush.msra.mxu0 %v473
        %512 = vmatpush.msra.mxu0 %v471
        %513 = vmatpush.msra.mxu0 %v469
        %514 = vmatpush.msra.mxu0 %v467
        %515 = vmatmul.f32.gmra.mxu0 %v357
        %v516 = vpop.f32.mrf.mxu0
        %v517 = vadd.f32 0.0, %v516
        %518 = vdwg.mxu0
        %519 = vmatpush.msra.mxu0 %v498
        %520 = vmatpush.msra.mxu0 %v496
        %521 = vmatpush.msra.mxu0 %v494
        %522 = vmatpush.msra.mxu0 %v492
        %523 = vmatpush.msra.mxu0 %v490
        %524 = vmatpush.msra.mxu0 %v488
        %525 = vmatpush.msra.mxu0 %v486
        %526 = vmatpush.msra.mxu0 %v484
        %527 = vmatpush.msra.mxu0 %v482
        %528 = vmatpush.msra.mxu0 %v480
        %529 = vmatpush.msra.mxu0 %v478
        %530 = vmatpush.msra.mxu0 %v476
        %531 = vmatpush.msra.mxu0 %v474
        %532 = vmatpush.msra.mxu0 %v472
        %533 = vmatpush.msra.mxu0 %v470
        %534 = vmatpush.msra.mxu0 %v468
        %535 = vmatmul.f32.gmra.mxu0 %v357
        %v536 = vpop.f32.mrf.mxu0
        %v537 = vadd.f32 0.0, %v536
        %538 = vdwg.mxu0
        %v539 = vadd.f32 %v425, %v517
        %v540 = vxor.u32 %v539, 2147483648
        %v541 = vmul.f32 %v540, 1.442695
        %v542 = vpow.pop %v541
        %v543 = vadd.f32 %v542, 1.0
        %v544 = vrcp.pop %v543
        %v545 = vmul.f32 %v543, %v544
        %v546 = vsub.f32 1.0, %v545
        %v547 = vmul.f32 %v544, %v546
        %v548 = vadd.f32 %v544, %v547
        %vm549 = vweird.f32 %v543
        %vm550 = vweird.f32 %v544
        %vm551 = vmor %vm549, %vm550
        %v552 = vsel %vm551, %v544, %v548
        %v553 = vand.u32 2147483647, %v543
        %vm554 = vcmp.eq.f32.partialorder %v553, 8.507059e+37
        %v555 = vand.u32 %v543, 2147483648
        %v556 = vor.u32 1.1754944e-38, %v555
        %v557 = vsel %vm554, %v556, %v552
        %v558 = vmul.f32 1.0, %v557
        %v559 = vld [vmem:[%s5] sm:$0x1]
        %v561 = vperm.slane %v559, 0
        %v563 = vadd.f32 %v445, %v561
        %v564 = vadd.f32 %v563, %v537
        %v565 = vxor.u32 %v564, 2147483648
        %v566 = vmul.f32 %v565, 1.442695
        %v567 = vpow.pop %v566
        %v568 = vadd.f32 %v567, 1.0
        %v569 = vrcp.pop %v568
        %v570 = vmul.f32 %v568, %v569
        %v571 = vsub.f32 1.0, %v570
        %v572 = vmul.f32 %v569, %v571
        %v573 = vadd.f32 %v569, %v572
        %vm574 = vweird.f32 %v568
        %vm575 = vweird.f32 %v569
        %vm576 = vmor %vm574, %vm575
        %v577 = vsel %vm576, %v569, %v573
        %v578 = vand.u32 2147483647, %v568
        %vm579 = vcmp.eq.f32.partialorder %v578, 8.507059e+37
        %v580 = vand.u32 %v568, 2147483648
        %v581 = vor.u32 1.1754944e-38, %v580
        %v582 = vsel %vm579, %v581, %v577
        %v583 = vmul.f32 1.0, %v582
        %v584 = vmul.f32 %v558, %v357
        %v585 = vld [vmem:[#allocation10] sm:$0xff]
        %v586 = vld [vmem:[#allocation10 + $0x8] sm:$0xff]
        %v587 = vld [vmem:[#allocation10 + $0x10] sm:$0xff]
        %v588 = vld [vmem:[#allocation10 + $0x18] sm:$0xff]
        %v589 = vld [vmem:[#allocation10 + $0x20] sm:$0xff]
        %v590 = vld [vmem:[#allocation10 + $0x28] sm:$0xff]
        %v591 = vld [vmem:[#allocation10 + $0x30] sm:$0xff]
        %v592 = vld [vmem:[#allocation10 + $0x38] sm:$0xff]
        %v593 = vld [vmem:[#allocation10 + $0x40] sm:$0xff]
        %v594 = vld [vmem:[#allocation10 + $0x48] sm:$0xff]
        %v595 = vld [vmem:[#allocation10 + $0x50] sm:$0xff]
        %v596 = vld [vmem:[#allocation10 + $0x58] sm:$0xff]
        %v597 = vld [vmem:[#allocation10 + $0x60] sm:$0xff]
        %v598 = vld [vmem:[#allocation10 + $0x68] sm:$0xff]
        %v599 = vld [vmem:[#allocation10 + $0x70] sm:$0xff]
        %v600 = vld [vmem:[#allocation10 + $0x78] sm:$0xff]
        %601 = vmatpush.msra.mxu0 %v600
        %602 = vmatpush.msra.mxu0 %v599
        %603 = vmatpush.msra.mxu0 %v598
        %604 = vmatpush.msra.mxu0 %v597
        %605 = vmatpush.msra.mxu0 %v596
        %606 = vmatpush.msra.mxu0 %v595
        %607 = vmatpush.msra.mxu0 %v594
        %608 = vmatpush.msra.mxu0 %v593
        %609 = vmatpush.msra.mxu0 %v592
        %610 = vmatpush.msra.mxu0 %v591
        %611 = vmatpush.msra.mxu0 %v590
        %612 = vmatpush.msra.mxu0 %v589
        %613 = vmatpush.msra.mxu0 %v588
        %614 = vmatpush.msra.mxu0 %v587
        %615 = vmatpush.msra.mxu0 %v586
        %616 = vmatpush.msra.mxu0 %v585
        %617 = vmatmul.f32.gmra.mxu0 %v584
        %v618 = vpop.f32.mrf.mxu0
        %v619 = vadd.f32 0.0, %v618
        %620 = vdwg.mxu0
        %v621 = vadd.f32 %v465, %v619
        %v622 = vtanh.pop %v621
        %v623 = vsub.f32 %v622, %v357
        %v624 = vmul.f32 %v583, %v623
        %v625 = vadd.f32 %v357, %v624
        %626 = vst [vmem:[%s356] sm:$0xff] %v625
        %s627 = sand.u32 %s171, 1
        %s628 = scalar_lea.sflag [#allocation4], %s627
        %s629 = sand.u32 %s171, 1
        %s630 = smul.addr %s629, 8
        %s631 = scalar_lea.vmem [#allocation11], %s630
        // Predicated region
        $region65: #{gate_forward.1} parent=43 // pred_check
          %p632 = pneg %p181
        $region66: #{gate_forward.1} parent=43 // pred_check_branch
          %634 = sbr.rel (%p632) target = $region68
        $region67: #{gate_forward.1} parent=43 // pred_region
          %636 = vsyncadd %s628, 0
          %s637 = smul.addr %s27, 8
          %s638 = scalar_lea.hbm %s6, %s637
          %s640 = sshll.u32 %s631, 4
          %s641 = int_to_ptr.vmem [resolvable:$true] %s640
          %s642 = sshll.u32 %s638, 4
          %s643 = int_to_ptr.hbm [resolvable:$true] %s642
          %645 = dma.vmem_to_hbm [thread:$0]  %s641, 128, %s643, %s628
        $region68: #{gate_forward.1} parent=43 // pred_fallthru
          _
      $region44: #{gate_forward.1} parent=5 // pred_fallthru
        _
      %p646 = scmp.le.s32.totalorder 2, %s22
      // Predicated region
      $region69: #{gate_forward.1} parent=5 // pred_check
        %p647 = pneg %p646
      $region70: #{gate_forward.1} parent=5 // pred_check_branch
        %649 = sbr.rel (%p647) target = $region72
      $region71: #{gate_forward.1} parent=5 // pred_region
        %s650 = ssub.s32 %s22, 2
        // Predicated region
        $region73: #{gate_forward.1} parent=71 // pred_check
          %p651 = pneg %p187
        $region74: #{gate_forward.1} parent=71 // pred_check_branch
          %653 = sbr.rel (%p651) target = $region76
        $region75: #{gate_forward.1} parent=71 // pred_region
          %s654 = sand.u32 %s172, 1
          %s655 = scalar_lea.sflag [#allocation4], %s654
          %s656 = sand.u32 %s172, 1
          %s657 = smul.addr %s656, 8
          %s658 = scalar_lea.vmem [#allocation11], %s657
          %660 = dma.done %s655, 128
        $region76: #{gate_forward.1} parent=71 // pred_fallthru
          _
      $region72: #{gate_forward.1} parent=5 // pred_fallthru
        _
    $region6: #{gate_forward.1} parent=1 // loop_footer
      %s26 = sadd.s32 1, %s22
    $region7: #{gate_forward.1} parent=1 // loop_footer_branch
      %21 = sbr.rel target = $region3
    $region8: #{gate_forward.1} parent=1 // loop_exit
      _
    %661 = vsyncpa [#allocation3], 1
    %s662 = scalar_lea.sflag [#allocation3], 1
    %663 = vsyncpa %s662, 1
    %664 = vsyncpa [#allocation6], 1
    %s665 = scalar_lea.sflag [#allocation6], 1
    %666 = vsyncpa %s665, 1
    %667 = vsyncpa [#allocation9], 1
    %668 = vsyncpa [#allocation4], 1
    %s669 = scalar_lea.sflag [#allocation4], 1
    %670 = vsyncpa %s669, 1

</llo_original>
